<compile_context>
chip_gen: v7x
topology: tpu7x:2x2x1
jax: 0.10.0
libtpu: 0.0.40
codegen_flags: <defaults>
</compile_context>

<pallas_src>
import math

import jax
import jax.numpy as jnp
from jax import lax
from jax.experimental import pallas as pl
from jax.experimental.pallas import tpu as pltpu


def _round_up(x, m):
    return ((x + m - 1) // m) * m


def _vmem_budget_bytes():
    """Usable VMEM budget: ~3/4 of physical capacity (96 MiB v5e/v6e, 48 MiB v7x)."""
    cap = None
    try:
        info = pltpu.get_tpu_info()
        cap = getattr(info, "vmem_capacity_bytes", None)
    except Exception:
        cap = None
    if not cap:
        cap = 64 * 1024 * 1024  # conservative fallback (v7x per-TensorCore VMEM)
    return (int(cap) * 3) // 4


def _choose_tiles(batch, in_features, out_features, vmem_budget):
    """Pick (tm, tn) minimizing an HBM/MXU roofline estimate under the VMEM budget."""
    K = max(int(in_features), 1)
    b8 = _round_up(max(int(batch), 1), 8)
    o128 = _round_up(max(int(out_features), 1), 128)

    tm_cands = sorted({min(t, b8) for t in (1024, 512, 256, 128, 64, 32, 16, 8)},
                      reverse=True)
    tn_cands = sorted({min(t, o128) for t in (o128, 2048, 1024, 512, 256, 128)},
                      reverse=True)

    usable = int(vmem_budget * 0.85)  # headroom for Mosaic internal scratch/alignment
    best = None
    for tn in tn_cands:
        for tm in tm_cands:
            # Double-buffered x, w, bias, out + sumsq scratch (f32).
            vmem = 4 * (2 * tm * K + 2 * tn * K + 2 * tm * tn + 2 * tn + tm)
            if vmem > usable:
                continue
            b_pad = _round_up(b8, tm)
            o_pad = _round_up(o128, tn)
            ni, nj = b_pad // tm, o_pad // tn
            # Weight is re-streamed once per batch tile unless it is fully
            # resident (nj == 1 -> constant block index -> single DMA).
            w_reads = ni if nj > 1 else 1
            bytes_hbm = 4.0 * (b_pad * K + w_reads * o_pad * K + b_pad * o_pad)
            flops = 2.0 * b_pad * o_pad * K
            cores = 2 if ni >= 2 else 1  # megacore only helps with >=2 parallel i tiles
            cost = max(bytes_hbm / 1.2e12, flops / (4.0e14 * cores)) + ni * nj * 0.35e-6
            if best is None or cost < best[0]:
                best = (cost, tm, tn)
    if best is None:
        # Nothing fits (huge in_features): smallest legal tiles.
        # TODO(synk): add a K-reduction grid axis + VMEM accumulator here.
        return min(8, b8), min(128, o128)
    return best[1], best[2]


def _pb_combi_input_kernel(x_ref, w_ref, b_ref, o_ref, sumsq_ref):
    # x_ref    : (tm, K)   f32  -- same block for every j (DMA'd once per batch tile)
    # w_ref    : (tn, K)   f32  -- PyTorch layout, un-transposed
    # b_ref    : (1, tn)   f32
    # o_ref    : (tm, tn)  f32
    # sumsq_ref: (tm, 1)   f32 VMEM scratch, persists across the inner j steps
    j = pl.program_id(1)

    # Hoist the per-row reduction out of the j loop: compute it only on the
    # first out-feature tile of each batch tile and reuse it afterwards.
    @pl.when(j == 0)
    def _():
        xb = x_ref[...]
        sumsq_ref[...] = jnp.sum(xb * xb, axis=1, keepdims=True)

    # Linear: x @ W^T + b.  Contracting the feature axes directly lets the MXU
    # consume the transposed RHS natively (no XLU transpose of the weight tile).
    lin = lax.dot_general(
        x_ref[...],
        w_ref[...],
        dimension_numbers=(((1,), (1,)), ((), ())),
        preferred_element_type=jnp.float32,
    ) + b_ref[...]

    # m = lin / (sqrt(2) * ||x||) == lin * rsqrt(2 * sum(x^2)); rsqrt runs on the EUP.
    m = lin * lax.rsqrt(sumsq_ref[...] * 2.0)
    o_ref[...] = lax.erf(m)


def pb_combi_input_forward(x, weight, bias):
    """Pallas TPU implementation of PBCombiInputLayer.forward.

    Args:
      x:      (batch, in_features) float32
      weight: (out_features, in_features) float32  (PyTorch Linear convention)
      bias:   (out_features,) float32
    Returns:
      (batch, out_features) float32
    """
    batch, in_features = x.shape
    out_features = weight.shape[0]

    vmem_budget = _vmem_budget_bytes()
    tm, tn = _choose_tiles(batch, in_features, out_features, vmem_budget)

    b_pad = _round_up(batch, tm)
    o_pad = _round_up(out_features, tn)

    x_p = x
    if b_pad != batch:
        x_p = jnp.pad(x, ((0, b_pad - batch), (0, 0)))
        # Give padded rows a nonzero norm so rsqrt(0) does not spray inf/NaN
        # into the (later sliced-off) padded output rows.
        x_p = x_p.at[batch:, 0].set(1.0)

    w_p = (
        weight
        if o_pad == out_features
        else jnp.pad(weight, ((0, o_pad - out_features), (0, 0)))
    )
    b2 = bias.reshape(1, out_features)
    b2_p = b2 if o_pad == out_features else jnp.pad(b2, ((0, 0), (0, o_pad - out_features)))

    grid = (b_pad // tm, o_pad // tn)

    out = pl.pallas_call(
        _pb_combi_input_kernel,
        out_shape=jax.ShapeDtypeStruct((b_pad, o_pad), jnp.float32),
        grid_spec=pltpu.PrefetchScalarGridSpec(
            num_scalar_prefetch=0,
            grid=grid,
            in_specs=[
                # x: constant block across j -> Pallas skips the re-DMA.
                pl.BlockSpec((tm, in_features), lambda i, j: (i, 0)),
                # weight streamed along j; when tn == o_pad the block index is
                # constant for the whole call and the weight is DMA'd exactly once.
                pl.BlockSpec((tn, in_features), lambda i, j: (j, 0)),
                pl.BlockSpec((1, tn), lambda i, j: (0, j)),
            ],
            out_specs=pl.BlockSpec((tm, tn), lambda i, j: (i, j)),
            scratch_shapes=[pltpu.VMEM((tm, 1), jnp.float32)],
        ),
        compiler_params=pltpu.CompilerParams(
            # i (batch tiles) shards across TensorCores; j stays sequential
            # because of the hoisted sumsq scratch.
            dimension_semantics=("parallel", "arbitrary"),
            vmem_limit_bytes=vmem_budget,
        ),
    )(x_p, w_p, b2_p)

    if b_pad != batch or o_pad != out_features:
        out = out[:batch, :out_features]
    return out


def _reference(x, weight, bias):
    lin = x @ weight.T + bias
    norm = jnp.sqrt(jnp.sum(x * x, axis=1, keepdims=True))
    return lax.erf(lin / (math.sqrt(2.0) * norm))


if __name__ == "__main__":
    key = jax.random.PRNGKey(0)
    batch, in_features, out_features = 8, 32, 16

    kx, kw, kb = jax.random.split(key, 3)
    x = jax.random.normal(kx, (batch, in_features), dtype=jnp.float32)
    # Deterministic parameter init (nn.Linear-style fan-in scaling).
    bound = 1.0 / math.sqrt(in_features)
    weight = jax.random.uniform(
        kw, (out_features, in_features), dtype=jnp.float32, minval=-bound, maxval=bound
    )
    bias = jax.random.uniform(
        kb, (out_features,), dtype=jnp.float32, minval=-bound, maxval=bound
    )

    out = pb_combi_input_forward(x, weight, bias)
    out = jax.block_until_ready(out)

    ref = _reference(x, weight, bias)
    assert out.shape == (batch, out_features)
    assert jnp.allclose(out, ref, atol=2e-5, rtol=1e-5), "mismatch vs reference"

    print("KERNEL_OK")
</pallas_src>

<mosaic_0001>
module attributes {stable_mosaic.version = 11 : i64} {
  func.func @_pb_combi_input_kernel(%arg0: i32, %arg1: i32, %arg2: memref<8x32xf32, #tpu.memory_space<vmem>>, %arg3: memref<128x32xf32, #tpu.memory_space<vmem>>, %arg4: memref<1x128xf32, #tpu.memory_space<vmem>>, %arg5: memref<8x128xf32, #tpu.memory_space<vmem>>, %arg6: memref<8x1xf32, #tpu.memory_space<vmem>>) attributes {dimension_semantics = [#tpu.dimension_semantics<parallel>, #tpu.dimension_semantics<arbitrary>], iteration_bounds = array<i64: 1, 1>, scalar_prefetch = 0 : i64, scratch_operands = 1 : i64, tpu.core_type = #tpu.core_type<tc>, window_params = [{transform_indices = @transform_0, window_bounds = array<i64: 8, 32>}, {transform_indices = @transform_1, window_bounds = array<i64: 128, 32>}, {transform_indices = @transform_2, window_bounds = array<i64: 1, 128>}, {transform_indices = @transform_3, window_bounds = array<i64: 8, 128>}]} {
    %c0_i32 = arith.constant 0 : i32
    %0 = arith.cmpi eq, %arg1, %c0_i32 : i32
    %1 = arith.extui %0 : i1 to i32
    %c0_i32_0 = arith.constant 0 : i32
    %2 = arith.cmpi ne, %1, %c0_i32_0 : i32
    scf.if %2 {
      %c0_11 = arith.constant 0 : index
      %c0_12 = arith.constant 0 : index
      %17 = vector.load %arg2[%c0_11, %c0_12] : memref<8x32xf32, #tpu.memory_space<vmem>>, vector<8x32xf32>
      %18 = arith.mulf %17, %17 : vector<8x32xf32>
      %cst_13 = arith.constant dense<0.000000e+00> : vector<8xf32>
      %19 = vector.multi_reduction <add>, %18, %cst_13 [1] : vector<8x32xf32> to vector<8xf32>
      %20 = vector.shape_cast %19 : vector<8xf32> to vector<8x1xf32>
      %c0_14 = arith.constant 0 : index
      %c0_15 = arith.constant 0 : index
      %21 = vector.load %arg6[%c0_14, %c0_15] : memref<8x1xf32, #tpu.memory_space<vmem>>, vector<8x1xf32>
      tpu.vector_store %arg6[%c0_14, %c0_15], %20 {strides = array<i32>} : memref<8x1xf32, #tpu.memory_space<vmem>>, vector<8x1xf32>,
    } else {
    }
    %c0 = arith.constant 0 : index
    %c0_1 = arith.constant 0 : index
    %3 = vector.load %arg2[%c0, %c0_1] : memref<8x32xf32, #tpu.memory_space<vmem>>, vector<8x32xf32>
    %c0_2 = arith.constant 0 : index
    %c0_3 = arith.constant 0 : index
    %4 = vector.load %arg3[%c0_2, %c0_3] : memref<128x32xf32, #tpu.memory_space<vmem>>, vector<128x32xf32>
    %cst = arith.constant dense<0.000000e+00> : vector<8x128xf32>
    %5 = tpu.matmul %3, %4, %cst {dimension_numbers = #tpu.dot_dimension_numbers<[1], [1], [0], [0], [0, 0, 1, 0], [], []>} : vector<8x32xf32>, vector<128x32xf32>, vector<8x128xf32> -> vector<8x128xf32>
    %c0_4 = arith.constant 0 : index
    %c0_5 = arith.constant 0 : index
    %6 = vector.load %arg4[%c0_4, %c0_5] : memref<1x128xf32, #tpu.memory_space<vmem>>, vector<1x128xf32>
    %7 = vector.broadcast %6 : vector<1x128xf32> to vector<8x128xf32>
    %8 = arith.addf %5, %7 : vector<8x128xf32>
    %c0_6 = arith.constant 0 : index
    %c0_7 = arith.constant 0 : index
    %9 = vector.load %arg6[%c0_6, %c0_7] : memref<8x1xf32, #tpu.memory_space<vmem>>, vector<8x1xf32>
    %cst_8 = arith.constant 2.000000e+00 : f32
    %10 = vector.broadcast %cst_8 : f32 to vector<8x1xf32>
    %11 = arith.mulf %9, %10 : vector<8x1xf32>
    %12 = math.rsqrt %11 : vector<8x1xf32>
    %13 = vector.broadcast %12 : vector<8x1xf32> to vector<8x128xf32>
    %14 = arith.mulf %8, %13 : vector<8x128xf32>
    %15 = math.erf %14 : vector<8x128xf32>
    %c0_9 = arith.constant 0 : index
    %c0_10 = arith.constant 0 : index
    %16 = vector.load %arg5[%c0_9, %c0_10] : memref<8x128xf32, #tpu.memory_space<vmem>>, vector<8x128xf32>
    tpu.vector_store %arg5[%c0_9, %c0_10], %15 {strides = array<i32>} : memref<8x128xf32, #tpu.memory_space<vmem>>, vector<8x128xf32>,
    return
  }
  func.func @transform_0(%arg0: i32, %arg1: i32) -> (i32, i32) {
    %c0_i32 = arith.constant 0 : i32
    %c0_i32_0 = arith.constant 0 : i32
    return %arg0, %c0_i32 : i32, i32
  }
  func.func @transform_1(%arg0: i32, %arg1: i32) -> (i32, i32) {
    %c0_i32 = arith.constant 0 : i32
    %c0_i32_0 = arith.constant 0 : i32
    return %arg1, %c0_i32 : i32, i32
  }
  func.func @transform_2(%arg0: i32, %arg1: i32) -> (i32, i32) {
    %c0_i32 = arith.constant 0 : i32
    %c0_i32_0 = arith.constant 0 : i32
    return %c0_i32, %arg1 : i32, i32
  }
  func.func @transform_3(%arg0: i32, %arg1: i32) -> (i32, i32) {
    %c0_i32 = arith.constant 0 : i32
    return %arg0, %arg1 : i32, i32
  }
}

</mosaic_0001>

<llo_original>
// kernel: tpu_custom_call.1
$region0: #{tpu_custom_call.1}
  #allocation0 [shape = 'u32[]', space=smem, size = 0x4, offset = 0x4, fixed_abs, tag = 'smem constant byte address 0x4 - core index']
  #allocation1 [shape = 'u32[144,128]{1,0:T(1,128)}', space=vmem, size = 0x12000, scoped, tag = 'internal scratch']
  #allocation2 [shape = 'f32[8,1]{1,0:T(8,128)}', space=vmem, size = 0x1000, scoped, tag = 'scratch operand']
  %s0 = inlined_call_operand.vmem [shape: f32[8,32], index: 0, kind: input, shape index: {}]
  %s1 = inlined_call_operand.vmem [shape: f32[128,32], index: 1, kind: input, shape index: {}]
  %s2 = inlined_call_operand.vmem [shape: f32[1,128], index: 2, kind: input, shape index: {}]
  %s3 = inlined_call_operand.hbm [shape: f32[8,128], index: 3, kind: output, shape index: {}]
  %s4 = sld [smem:[#allocation0]]
  $region26: #{tpu_custom_call.1} parent=0
    _
  %s6 = ssub.s32 1, %s4
  %s7 = scalar_select 0, %s6, %s4
  $region1: #{tpu_custom_call.1} parent=0
    #allocation3 [shape = 'u8[4096]{0}', space=vmem, size = 0x1000, scoped, tag = 'output window, operand 0, single buffered']
    #allocation4 [shape = 's32[1]{0}', space=sflag, size = 0x4, scoped, tag = 'scoped memory for tpu_custom_call.1']
    %8 = vsyncpa [#allocation4], 0
    // Predicated region
    $region2: #{tpu_custom_call.1} parent=1 // pred_check
      _
    $region3: #{tpu_custom_call.1} parent=1 // pred_check_branch
      %10 = sbr.rel (0) target = $region5
    $region4: #{tpu_custom_call.1} parent=1 // pred_region
      _
    $region5: #{tpu_custom_call.1} parent=1 // pred_fallthru
      _
    // Predicated region
    $region6: #{tpu_custom_call.1} parent=1 // pred_check
      _
    $region7: #{tpu_custom_call.1} parent=1 // pred_check_branch
      %12 = sbr.rel (0) target = $region9
    $region8: #{tpu_custom_call.1} parent=1 // pred_region
      _
    $region9: #{tpu_custom_call.1} parent=1 // pred_fallthru
      _
    // Predicated region
    $region10: #{tpu_custom_call.1} parent=1 // pred_check
      _
    $region11: #{tpu_custom_call.1} parent=1 // pred_check_branch
      %14 = sbr.rel (0) target = $region13
    $region12: #{tpu_custom_call.1} parent=1 // pred_region
      _
    $region13: #{tpu_custom_call.1} parent=1 // pred_fallthru
      _
    %p15 = scmp.eq.s32.totalorder 0, 0
    // Predicated region
    $region14: #{tpu_custom_call.1} parent=1 // pred_check
      %p16 = pneg %p15
    $region15: #{tpu_custom_call.1} parent=1 // pred_check_branch
      %18 = sbr.rel (%p16) target = $region17
    $region16: #{tpu_custom_call.1} parent=1 // pred_region
      %v19 = vld [vmem:[%s0] sm:$0xff]
      %v20 = vmul.f32 %v19, %v19
      %vm21 = vcmask 261120
      %v22 = vsel %vm21, %v20, 0.0
      %23 = vadd.xlane.f32.xlu0 %v22
      %v24 = vpop.xlane.xlu0 %23
      %vm25 = vcmask 7168
      %26 = vst.msk [vmem:[#allocation2] sm:$0xff] %vm25, %v24
    $region17: #{tpu_custom_call.1} parent=1 // pred_fallthru
      _
    %v27 = vld [vmem:[%s0] sm:$0xff]
    %v28 = vld [vmem:[%s1] sm:$0xff]
    %v29 = vld [vmem:[%s1 + $0x8] sm:$0xff]
    %v30 = vld [vmem:[%s1 + $0x10] sm:$0xff]
    %v31 = vld [vmem:[%s1 + $0x18] sm:$0xff]
    %v32 = vld [vmem:[%s1 + $0x20] sm:$0xff]
    %v33 = vld [vmem:[%s1 + $0x28] sm:$0xff]
    %v34 = vld [vmem:[%s1 + $0x30] sm:$0xff]
    %v35 = vld [vmem:[%s1 + $0x38] sm:$0xff]
    %v36 = vld [vmem:[%s1 + $0x40] sm:$0xff]
    %v37 = vld [vmem:[%s1 + $0x48] sm:$0xff]
    %v38 = vld [vmem:[%s1 + $0x50] sm:$0xff]
    %v39 = vld [vmem:[%s1 + $0x58] sm:$0xff]
    %v40 = vld [vmem:[%s1 + $0x60] sm:$0xff]
    %v41 = vld [vmem:[%s1 + $0x68] sm:$0xff]
    %v42 = vld [vmem:[%s1 + $0x70] sm:$0xff]
    %v43 = vld [vmem:[%s1 + $0x78] sm:$0xff]
    %v44 = vld [vmem:[%s2] sm:$0x1]
    %v46 = vlaneseq
    %v47 = vshrl.u32 %v46, 7
    %v48 = vsub.s32 0, %v47
    %v49 = vrot.slane %v44, %v48
    %vm51 = vcmask 261120
    %v53 = vsel %vm51, %v27, 0
    %v56 = vsel %vm51, %v28, 0
    %v59 = vsel %vm51, %v29, 0
    %v62 = vsel %vm51, %v30, 0
    %v65 = vsel %vm51, %v31, 0
    %v68 = vsel %vm51, %v32, 0
    %v71 = vsel %vm51, %v33, 0
    %v74 = vsel %vm51, %v34, 0
    %v77 = vsel %vm51, %v35, 0
    %v80 = vsel %vm51, %v36, 0
    %v83 = vsel %vm51, %v37, 0
    %v86 = vsel %vm51, %v38, 0
    %v89 = vsel %vm51, %v39, 0
    %v92 = vsel %vm51, %v40, 0
    %v95 = vsel %vm51, %v41, 0
    %v98 = vsel %vm51, %v42, 0
    %v101 = vsel %vm51, %v43, 0
    %103 = vmatprep.subr.mxu0 0.0
    %104 = vmatpush1.xpose.msra.mxu0 %v56
    %105 = vmatprep.subr.mxu0 0.0
    %106 = vmatpush1.xpose.msra.mxu0 %v59
    %107 = vmatprep.subr.mxu0 0.0
    %108 = vmatpush1.xpose.msra.mxu0 %v62
    %109 = vmatprep.subr.mxu0 0.0
    %110 = vmatpush1.xpose.msra.mxu0 %v65
    %111 = vmatprep.subr.mxu0 0.0
    %112 = vmatpush1.xpose.msra.mxu0 %v68
    %113 = vmatprep.subr.mxu0 0.0
    %114 = vmatpush1.xpose.msra.mxu0 %v71
    %115 = vmatprep.subr.mxu0 0.0
    %116 = vmatpush1.xpose.msra.mxu0 %v74
    %117 = vmatprep.subr.mxu0 0.0
    %118 = vmatpush1.xpose.msra.mxu0 %v77
    %119 = vmatprep.subr.mxu0 0.0
    %120 = vmatpush1.xpose.msra.mxu0 %v80
    %121 = vmatprep.subr.mxu0 0.0
    %122 = vmatpush1.xpose.msra.mxu0 %v83
    %123 = vmatprep.subr.mxu0 0.0
    %124 = vmatpush1.xpose.msra.mxu0 %v86
    %125 = vmatprep.subr.mxu0 0.0
    %126 = vmatpush1.xpose.msra.mxu0 %v89
    %127 = vmatprep.subr.mxu0 0.0
    %128 = vmatpush1.xpose.msra.mxu0 %v92
    %129 = vmatprep.subr.mxu0 0.0
    %130 = vmatpush1.xpose.msra.mxu0 %v95
    %131 = vmatprep.subr.mxu0 0.0
    %132 = vmatpush1.xpose.msra.mxu0 %v98
    %133 = vmatprep.subr.mxu0 0.0
    %134 = vmatpush1.xpose.msra.mxu0 %v101
    %135 = vmatprep.subr.mxu0 0.0
    %136 = vmatpush1.xpose.msra.mxu0 0.0
    %137 = vmatprep.subr.mxu0 0.0
    %138 = vmatpush1.xpose.msra.mxu0 0.0
    %139 = vmatprep.subr.mxu0 0.0
    %140 = vmatpush1.xpose.msra.mxu0 0.0
    %141 = vmatprep.subr.mxu0 0.0
    %142 = vmatpush1.xpose.msra.mxu0 0.0
    %143 = vmatprep.subr.mxu0 0.0
    %144 = vmatpush1.xpose.msra.mxu0 0.0
    %145 = vmatprep.subr.mxu0 0.0
    %146 = vmatpush1.xpose.msra.mxu0 0.0
    %147 = vmatprep.subr.mxu0 0.0
    %148 = vmatpush1.xpose.msra.mxu0 0.0
    %149 = vmatprep.subr.mxu0 0.0
    %150 = vmatpush1.xpose.msra.mxu0 0.0
    %151 = vmatprep.subr.mxu0 0.0
    %152 = vmatpush1.xpose.msra.mxu0 0.0
    %153 = vmatprep.subr.mxu0 0.0
    %154 = vmatpush1.xpose.msra.mxu0 0.0
    %155 = vmatprep.subr.mxu0 0.0
    %156 = vmatpush1.xpose.msra.mxu0 0.0
    %157 = vmatprep.subr.mxu0 0.0
    %158 = vmatpush1.xpose.msra.mxu0 0.0
    %159 = vmatprep.subr.mxu0 0.0
    %160 = vmatpush1.xpose.msra.mxu0 0.0
    %161 = vmatprep.subr.mxu0 0.0
    %162 = vmatpush1.xpose.msra.mxu0 0.0
    %163 = vmatprep.subr.mxu0 0.0
    %164 = vmatpush1.xpose.msra.mxu0 0.0
    %165 = vmatprep.subr.mxu0 0.0
    %166 = vmatpush1.xpose.msra.mxu0 0.0
    %167 = vmatprep.mubr.f32.mxu0 0.0
    %168 = vmatmul.mubr.f32.gmra.mrb[0].mxu0 %v53
    %v169 = vpop.f32.mrb[0].mxu0
    %v170 = vadd.f32 %v49, %v169
    %v171 = vpop.f32.mrb[0].mxu0
    %172 = vdwg.mxu0
    %v173 = vld [vmem:[#allocation2] sm:$0xff]
    %v174 = vmul.f32 %v173, 2.0
    %v175 = vrsqrt.pop %v174
    %177 = vset.pattern.permute.xlu0 0
    %178 = vperm.xlu0 %177, %v175
    %v179 = vpop.permute.xlu0 %178
    %v181 = vmul.f32 %v170, %v179
    %v182 = verf.f32.pop %v181
    %183 = vst [vmem:[#allocation3] sm:$0xff] %v182
    // Predicated region
    $region18: #{tpu_custom_call.1} parent=1 // pred_check
      _
    $region19: #{tpu_custom_call.1} parent=1 // pred_check_branch
      %185 = sbr.rel (0) target = $region21
    $region20: #{tpu_custom_call.1} parent=1 // pred_region
      %s187 = ssub.s32 128, 128
      %188 = vsyncadd [#allocation4], %s187
      %s190 = sshll.u32 [#allocation3], 4
      %s191 = int_to_ptr.vmem [resolvable:$true] %s190
      %193 = dma.vmem_to_hbm [thread:$0]  %s191, 128, %s3, [#allocation4]
    $region21: #{tpu_custom_call.1} parent=1 // pred_fallthru
      _
    // Predicated region
    $region22: #{tpu_custom_call.1} parent=1 // pred_check
      _
    $region23: #{tpu_custom_call.1} parent=1 // pred_check_branch
      %195 = sbr.rel (0) target = $region25
    $region24: #{tpu_custom_call.1} parent=1 // pred_region
      %196 = dma.done [#allocation4], 128
    $region25: #{tpu_custom_call.1} parent=1 // pred_fallthru
      _
    %197 = vsyncpa [#allocation4], 1

</llo_original>
